<compile_context>
chip_gen: v6e
topology: v6e:2x2x1
jax: 0.10.0
libtpu: 0.0.40
codegen_flags: <defaults>
</compile_context>

<pallas_src>
import functools

import jax
import jax.numpy as jnp
from jax.experimental import pallas as pl
from jax.experimental.pallas import tpu as pltpu

ACTION_RANGE = 2.0
ACTION_DIM = 1
HIDDEN = 16

_LOG_2PI = float(jnp.log(2.0 * jnp.pi))


def _pick_batch_tile(batch):
    """Largest lane-aligned batch tile dividing `batch` (full batch if tiny)."""
    for bt in (512, 256, 128):
        if batch % bt == 0:
            return bt
    return batch


def actor_kernel(state_ref, eps_ref, p_ref, out_ref, *, state_dim):
    A = ACTION_DIM
    H = HIDDEN

    state_t = state_ref[...]            # (S,  Bt)  batch on lanes
    eps = eps_ref[...]                  # (A,  Bt)
    p = p_ref[...]                      # (4H, L)   packed params (resident block)

    # static slices into the packed parameter slab
    w1_t = p[0:H, 0:state_dim]          # (H, S)
    w2_t = p[H:2 * H, 0:H]              # (H, H)
    wh_t = p[2 * H:3 * H, 0:H]          # (H, H): rows [0,2A) = [wmu|wsig].T, rest 0
    bias = p[3 * H:4 * H, 0:3]          # (H, 3): lane 0 = b1, 1 = b2, 2 = bh
    b1 = bias[:, 0:1]                   # (H, 1) — broadcasts over B lanes
    b2 = bias[:, 1:2]
    bh = bias[:, 2:3]

    # fc1 -> relu -> fc2 -> relu -> fused mu/sigma head (3 dependent matmuls)
    h1 = jnp.maximum(jnp.dot(w1_t, state_t, preferred_element_type=jnp.float32) + b1, 0.0)
    h2 = jnp.maximum(jnp.dot(w2_t, h1, preferred_element_type=jnp.float32) + b2, 0.0)
    heads = jnp.dot(wh_t, h2, preferred_element_type=jnp.float32) + bh      # (H, Bt)

    mu = heads[0:A, :]                          # (A, Bt)
    z = heads[A:2 * A, :]                       # sigma pre-activation
    sigma = jnp.logaddexp(z, 0.0)               # softplus
    # stable log-softplus: log(softplus(z)) ~= z for z << 0 (avoids -inf/nan)
    log_sigma = jnp.where(z < -20.0, z, jnp.log(sigma))

    # Normal(mu, sigma).rsample() with host-supplied eps ~ N(0, 1)
    # TODO(synk): eps could be generated in-kernel (pltpu.prng_seed +
    # pltpu.stateful_normal) to also drop the eps HBM traffic / host RNG.
    # TODO(synk): the `action is not None` branch (atanh(action/range)) is not wired.
    act_pre = mu + sigma * eps

    # entropy of Normal: 0.5 + 0.5*log(2*pi) + log(sigma)
    entropy = 0.5 + 0.5 * _LOG_2PI + log_sigma                  # (A, Bt)
    # log_prob at act_pre: (act_pre - mu) == sigma*eps  ->  term is -0.5*eps^2
    logp = -0.5 * (eps * eps) - log_sigma - 0.5 * _LOG_2PI      # (A, Bt)

    # tanh squashing + change-of-variables correction
    act_tanh = jnp.tanh(act_pre)
    act = act_tanh * ACTION_RANGE
    logp = logp - jnp.log(ACTION_RANGE * (1.0 - act_tanh * act_tanh) + 1e-6)
    logp_sum = jnp.sum(logp, axis=0, keepdims=True)             # (1, Bt)

    # lane-dense packed output; direct row-slice stores (no in-kernel concat)
    out_ref[0:A, :] = act
    out_ref[A:2 * A, :] = entropy
    out_ref[2 * A:2 * A + 1, :] = logp_sum


def pack_params(params, state_dim):
    """Pack the 8 Linear params into one (4*HIDDEN, max(HIDDEN, S)) f32 slab.

    Row layout (16-row blocks, weights stored transposed = (out, in)):
      [0,  16)  w1.T  (H, S)           lanes [0, S)
      [16, 32)  w2.T  (H, H)           lanes [0, H)
      [32, 48)  [wmu | wsig].T rows [0, 2A), rest zero
      [48, 64)  bias columns: lane0 = b1, lane1 = b2, lane2 = [bmu; bsig; 0...]
    """
    w1, b1, w2, b2, wmu, bmu, wsig, bsig = params
    A, H = ACTION_DIM, HIDDEN
    assert 2 * A <= H, "fused-head packing requires 2*action_dim <= HIDDEN"
    L = max(H, state_dim)
    P = jnp.zeros((4 * H, L), jnp.float32)
    P = P.at[0:H, 0:state_dim].set(w1.T)
    P = P.at[H:2 * H, 0:H].set(w2.T)
    P = P.at[2 * H:2 * H + A, 0:H].set(wmu.T)
    P = P.at[2 * H + A:2 * H + 2 * A, 0:H].set(wsig.T)
    P = P.at[3 * H:4 * H, 0:1].set(b1.reshape(H, 1))
    P = P.at[3 * H:4 * H, 1:2].set(b2.reshape(H, 1))
    P = P.at[3 * H:3 * H + A, 2:3].set(bmu.reshape(A, 1))
    P = P.at[3 * H + A:3 * H + 2 * A, 2:3].set(bsig.reshape(A, 1))
    return P


def actor_forward(state_t, eps_t, packed_params):
    """state_t: (S, B) f32 batch-on-lanes; eps_t: (A, B) f32 standard normal.

    Returns (act, log_prob, entropy) in the original (B, A)/(B, 1) orientation.
    """
    S, B = state_t.shape
    A = ACTION_DIM
    bt = _pick_batch_tile(B)
    rows, lanes = packed_params.shape

    out = pl.pallas_call(
        functools.partial(actor_kernel, state_dim=S),
        grid=(B // bt,),
        in_specs=[
            pl.BlockSpec((S, bt), lambda i: (0, i)),
            pl.BlockSpec((A, bt), lambda i: (0, i)),
            pl.BlockSpec((rows, lanes), lambda i: (0, 0)),   # resident param slab
        ],
        out_specs=pl.BlockSpec((2 * A + 1, bt), lambda i: (0, i)),
        out_shape=jax.ShapeDtypeStruct((2 * A + 1, B), jnp.float32),
        compiler_params=pltpu.CompilerParams(
            dimension_semantics=("parallel",)),   # batch tiles split across TCs (v7x)
    )(state_t, eps_t, packed_params)

    act = out[0:A, :].T                        # (B, A)
    entropy = out[A:2 * A, :].T                # (B, A)
    log_prob = out[2 * A:2 * A + 1, :].T       # (B, 1)
    return act, log_prob, entropy


def init_params(key, state_dim):
    """nn.Linear-style init (uniform +-1/sqrt(fan_in)); weights stored (in, out)."""
    def linear(k, fan_in, fan_out):
        kw, kb = jax.random.split(k)
        bound = 1.0 / jnp.sqrt(fan_in)
        w = jax.random.uniform(kw, (fan_in, fan_out), jnp.float32, -bound, bound)
        b = jax.random.uniform(kb, (1, fan_out), jnp.float32, -bound, bound)
        return w, b

    k1, k2, k3, k4 = jax.random.split(key, 4)
    w1, b1 = linear(k1, state_dim, HIDDEN)
    w2, b2 = linear(k2, HIDDEN, HIDDEN)
    wmu, bmu = linear(k3, HIDDEN, ACTION_DIM)
    wsig, bsig = linear(k4, HIDDEN, ACTION_DIM)
    return (w1, b1, w2, b2, wmu, bmu, wsig, bsig)


def _reference(state, eps, params):
    """Pure-JAX reference (PyTorch-equivalent math), state (B,S), eps (B,A)."""
    w1, b1, w2, b2, wmu, bmu, wsig, bsig = params
    a = jnp.maximum(state @ w1 + b1, 0.0)
    a = jnp.maximum(a @ w2 + b2, 0.0)
    mu = a @ wmu + bmu
    sigma = jax.nn.softplus(a @ wsig + bsig)
    act_pre = mu + sigma * eps
    entropy = 0.5 + 0.5 * jnp.log(2 * jnp.pi) + jnp.log(sigma)
    lp = (-((act_pre - mu) ** 2) / (2 * sigma ** 2)
          - jnp.log(sigma) - 0.5 * jnp.log(2 * jnp.pi))
    at = jnp.tanh(act_pre)
    lp = lp - jnp.log(ACTION_RANGE * (1 - at ** 2) + 1e-6)
    return at * ACTION_RANGE, jnp.sum(lp, 1, keepdims=True), entropy


if __name__ == "__main__":
    key = jax.random.PRNGKey(0)
    k_params, k_s1, k_e1, k_s2, k_e2 = jax.random.split(key, 5)

    state_dim = 8
    params = init_params(k_params, state_dim)
    packed = pack_params(params, state_dim)

    # --- small case (B=8): single full-array block, grid=(1,) ---
    B1 = 8
    state_t1 = jax.random.normal(k_s1, (state_dim, B1), jnp.float32)
    eps_t1 = jax.random.normal(k_e1, (ACTION_DIM, B1), jnp.float32)
    act1, logp1, ent1 = actor_forward(state_t1, eps_t1, packed)
    jax.block_until_ready((act1, logp1, ent1))

    ra, rl, re = _reference(state_t1.T, eps_t1.T, params)
    assert jnp.allclose(act1, ra, atol=1e-4), (act1, ra)
    assert jnp.allclose(logp1, rl, atol=1e-4), (logp1, rl)
    assert jnp.allclose(ent1, re, atol=1e-4), (ent1, re)

    # --- lane-tiled case (B=256): 128-wide batch tiles, parallel grid axis ---
    B2 = 256
    state_t2 = jax.random.normal(k_s2, (state_dim, B2), jnp.float32)
    eps_t2 = jax.random.normal(k_e2, (ACTION_DIM, B2), jnp.float32)
    act2, logp2, ent2 = actor_forward(state_t2, eps_t2, packed)
    jax.block_until_ready((act2, logp2, ent2))

    ra2, rl2, re2 = _reference(state_t2.T, eps_t2.T, params)
    assert jnp.allclose(act2, ra2, atol=1e-4)
    assert jnp.allclose(logp2, rl2, atol=1e-4)
    assert jnp.allclose(ent2, re2, atol=1e-4)

    print("KERNEL_OK")
</pallas_src>

<mosaic_0001>
module attributes {stable_mosaic.version = 11 : i64} {
  func.func @actor_kernel(%arg0: i32, %arg1: memref<8x8xf32, #tpu.memory_space<vmem>>, %arg2: memref<1x8xf32, #tpu.memory_space<vmem>>, %arg3: memref<64x16xf32, #tpu.memory_space<vmem>>, %arg4: memref<3x8xf32, #tpu.memory_space<vmem>>) attributes {dimension_semantics = [#tpu.dimension_semantics<parallel>], iteration_bounds = array<i64: 1>, scalar_prefetch = 0 : i64, scratch_operands = 0 : i64, tpu.core_type = #tpu.core_type<tc>, window_params = [{transform_indices = @transform_0, window_bounds = array<i64: 8, 8>}, {transform_indices = @transform_1, window_bounds = array<i64: 1, 8>}, {pipeline_mode = #tpu.pipeline_mode<synchronous>, transform_indices = @transform_2, window_bounds = array<i64: 64, 16>}, {transform_indices = @transform_3, window_bounds = array<i64: 3, 8>}]} {
    %c0 = arith.constant 0 : index
    %c0_0 = arith.constant 0 : index
    %0 = vector.load %arg1[%c0, %c0_0] : memref<8x8xf32, #tpu.memory_space<vmem>>, vector<8x8xf32>
    %c0_1 = arith.constant 0 : index
    %c0_2 = arith.constant 0 : index
    %1 = vector.load %arg2[%c0_1, %c0_2] : memref<1x8xf32, #tpu.memory_space<vmem>>, vector<1x8xf32>
    %c0_3 = arith.constant 0 : index
    %c0_4 = arith.constant 0 : index
    %2 = vector.load %arg3[%c0_3, %c0_4] : memref<64x16xf32, #tpu.memory_space<vmem>>, vector<64x16xf32>
    %3 = vector.extract_strided_slice %2 {offsets = [0, 0], sizes = [16, 8], strides = [1, 1]} : vector<64x16xf32> to vector<16x8xf32>
    %4 = vector.extract_strided_slice %2 {offsets = [16, 0], sizes = [16, 16], strides = [1, 1]} : vector<64x16xf32> to vector<16x16xf32>
    %5 = vector.extract_strided_slice %2 {offsets = [32, 0], sizes = [16, 16], strides = [1, 1]} : vector<64x16xf32> to vector<16x16xf32>
    %6 = vector.extract_strided_slice %2 {offsets = [48, 0], sizes = [16, 3], strides = [1, 1]} : vector<64x16xf32> to vector<16x3xf32>
    %7 = vector.extract_strided_slice %6 {offsets = [0, 0], sizes = [16, 1], strides = [1, 1]} : vector<16x3xf32> to vector<16x1xf32>
    %8 = vector.extract_strided_slice %6 {offsets = [0, 1], sizes = [16, 1], strides = [1, 1]} : vector<16x3xf32> to vector<16x1xf32>
    %9 = vector.extract_strided_slice %6 {offsets = [0, 2], sizes = [16, 1], strides = [1, 1]} : vector<16x3xf32> to vector<16x1xf32>
    %cst = arith.constant dense<0.000000e+00> : vector<16x8xf32>
    %10 = tpu.matmul %3, %0, %cst {dimension_numbers = #tpu.dot_dimension_numbers<[1], [0], [0], [1], [0, 0, 1, 1], [], []>} : vector<16x8xf32>, vector<8x8xf32>, vector<16x8xf32> -> vector<16x8xf32>
    %11 = vector.broadcast %7 : vector<16x1xf32> to vector<16x8xf32>
    %12 = arith.addf %10, %11 : vector<16x8xf32>
    %cst_5 = arith.constant 0.000000e+00 : f32
    %13 = vector.broadcast %cst_5 : f32 to vector<16x8xf32>
    %14 = arith.maximumf %12, %13 : vector<16x8xf32>
    %cst_6 = arith.constant dense<0.000000e+00> : vector<16x8xf32>
    %15 = tpu.matmul %4, %14, %cst_6 {dimension_numbers = #tpu.dot_dimension_numbers<[1], [0], [0], [1], [0, 0, 1, 1], [], []>} : vector<16x16xf32>, vector<16x8xf32>, vector<16x8xf32> -> vector<16x8xf32>
    %16 = vector.broadcast %8 : vector<16x1xf32> to vector<16x8xf32>
    %17 = arith.addf %15, %16 : vector<16x8xf32>
    %cst_7 = arith.constant 0.000000e+00 : f32
    %18 = vector.broadcast %cst_7 : f32 to vector<16x8xf32>
    %19 = arith.maximumf %17, %18 : vector<16x8xf32>
    %cst_8 = arith.constant dense<0.000000e+00> : vector<16x8xf32>
    %20 = tpu.matmul %5, %19, %cst_8 {dimension_numbers = #tpu.dot_dimension_numbers<[1], [0], [0], [1], [0, 0, 1, 1], [], []>} : vector<16x16xf32>, vector<16x8xf32>, vector<16x8xf32> -> vector<16x8xf32>
    %21 = vector.broadcast %9 : vector<16x1xf32> to vector<16x8xf32>
    %22 = arith.addf %20, %21 : vector<16x8xf32>
    %23 = vector.extract_strided_slice %22 {offsets = [0, 0], sizes = [1, 8], strides = [1, 1]} : vector<16x8xf32> to vector<1x8xf32>
    %24 = vector.extract_strided_slice %22 {offsets = [1, 0], sizes = [1, 8], strides = [1, 1]} : vector<16x8xf32> to vector<1x8xf32>
    %cst_9 = arith.constant 0.000000e+00 : f32
    %25 = vector.broadcast %cst_9 : f32 to vector<1x8xf32>
    %26 = arith.maximumf %24, %25 : vector<1x8xf32>
    %27 = vector.broadcast %cst_9 : f32 to vector<1x8xf32>
    %28 = arith.subf %24, %27 : vector<1x8xf32>
    %29 = arith.cmpf one, %28, %28 : vector<1x8xf32>
    %30 = vector.broadcast %cst_9 : f32 to vector<1x8xf32>
    %31 = arith.addf %24, %30 : vector<1x8xf32>
    %32 = math.absf %28 : vector<1x8xf32>
    %cst_10 = arith.constant 0.000000e+00 : f32
    %33 = vector.broadcast %cst_10 : f32 to vector<1x8xf32>
    %34 = arith.subf %33, %32 : vector<1x8xf32>
    %35 = math.exp %34 : vector<1x8xf32>
    %36 = math.log1p %35 : vector<1x8xf32>
    %37 = arith.addf %26, %36 : vector<1x8xf32>
    %38 = arith.select %29, %31, %37 : vector<1x8xi1>, vector<1x8xf32>
    %cst_11 = arith.constant -2.000000e+01 : f32
    %39 = vector.broadcast %cst_11 : f32 to vector<1x8xf32>
    %40 = arith.cmpf olt, %24, %39 : vector<1x8xf32>
    %41 = math.log %38 : vector<1x8xf32>
    %42 = arith.select %40, %24, %41 : vector<1x8xi1>, vector<1x8xf32>
    %43 = arith.mulf %38, %1 : vector<1x8xf32>
    %44 = arith.addf %23, %43 : vector<1x8xf32>
    %cst_12 = arith.constant 1.41893852 : f32
    %45 = vector.broadcast %cst_12 : f32 to vector<1x8xf32>
    %46 = arith.addf %45, %42 : vector<1x8xf32>
    %47 = arith.mulf %1, %1 : vector<1x8xf32>
    %cst_13 = arith.constant -5.000000e-01 : f32
    %48 = vector.broadcast %cst_13 : f32 to vector<1x8xf32>
    %49 = arith.mulf %48, %47 : vector<1x8xf32>
    %50 = arith.subf %49, %42 : vector<1x8xf32>
    %cst_14 = arith.constant 0.918938517 : f32
    %51 = vector.broadcast %cst_14 : f32 to vector<1x8xf32>
    %52 = arith.subf %50, %51 : vector<1x8xf32>
    %53 = math.tanh %44 : vector<1x8xf32>
    %cst_15 = arith.constant 2.000000e+00 : f32
    %54 = vector.broadcast %cst_15 : f32 to vector<1x8xf32>
    %55 = arith.mulf %53, %54 : vector<1x8xf32>
    %56 = arith.mulf %53, %53 : vector<1x8xf32>
    %cst_16 = arith.constant 1.000000e+00 : f32
    %57 = vector.broadcast %cst_16 : f32 to vector<1x8xf32>
    %58 = arith.subf %57, %56 : vector<1x8xf32>
    %cst_17 = arith.constant 2.000000e+00 : f32
    %59 = vector.broadcast %cst_17 : f32 to vector<1x8xf32>
    %60 = arith.mulf %59, %58 : vector<1x8xf32>
    %cst_18 = arith.constant 9.99999997E-7 : f32
    %61 = vector.broadcast %cst_18 : f32 to vector<1x8xf32>
    %62 = arith.addf %60, %61 : vector<1x8xf32>
    %63 = math.log %62 : vector<1x8xf32>
    %64 = arith.subf %52, %63 : vector<1x8xf32>
    %cst_19 = arith.constant dense<0.000000e+00> : vector<8xf32>
    %65 = vector.multi_reduction <add>, %64, %cst_19 [0] : vector<1x8xf32> to vector<8xf32>
    %66 = vector.shape_cast %65 : vector<8xf32> to vector<1x8xf32>
    %c0_20 = arith.constant 0 : index
    %c0_21 = arith.constant 0 : index
    %67 = vector.load %arg4[%c0_20, %c0_21] : memref<3x8xf32, #tpu.memory_space<vmem>>, vector<1x8xf32>
    tpu.vector_store %arg4[%c0_20, %c0_21], %55 {strides = array<i32>} : memref<3x8xf32, #tpu.memory_space<vmem>>, vector<1x8xf32>,
    %c1 = arith.constant 1 : index
    %c0_22 = arith.constant 0 : index
    %68 = vector.load %arg4[%c1, %c0_22] : memref<3x8xf32, #tpu.memory_space<vmem>>, vector<1x8xf32>
    tpu.vector_store %arg4[%c1, %c0_22], %46 {strides = array<i32>} : memref<3x8xf32, #tpu.memory_space<vmem>>, vector<1x8xf32>,
    %c2 = arith.constant 2 : index
    %c0_23 = arith.constant 0 : index
    %69 = vector.load %arg4[%c2, %c0_23] : memref<3x8xf32, #tpu.memory_space<vmem>>, vector<1x8xf32>
    tpu.vector_store %arg4[%c2, %c0_23], %66 {strides = array<i32>} : memref<3x8xf32, #tpu.memory_space<vmem>>, vector<1x8xf32>,
    return
  }
  func.func @transform_0(%arg0: i32) -> (i32, i32) {
    %c0_i32 = arith.constant 0 : i32
    %c0_i32_0 = arith.constant 0 : i32
    return %c0_i32, %arg0 : i32, i32
  }
  func.func @transform_1(%arg0: i32) -> (i32, i32) {
    %c0_i32 = arith.constant 0 : i32
    %c0_i32_0 = arith.constant 0 : i32
    return %c0_i32, %arg0 : i32, i32
  }
  func.func @transform_2(%arg0: i32) -> (i32, i32) {
    %c0_i32 = arith.constant 0 : i32
    %c0_i32_0 = arith.constant 0 : i32
    %c0_i32_1 = arith.constant 0 : i32
    return %c0_i32, %c0_i32_0 : i32, i32
  }
  func.func @transform_3(%arg0: i32) -> (i32, i32) {
    %c0_i32 = arith.constant 0 : i32
    %c0_i32_0 = arith.constant 0 : i32
    return %c0_i32, %arg0 : i32, i32
  }
}

</mosaic_0001>

<llo_original>
// kernel: tpu_custom_call.1
$region0: #{tpu_custom_call.1}
  #allocation0 [shape = 'u32[]', space=smem, size = 0x4, offset = 0x4, fixed_abs, tag = 'smem constant byte address 0x4 - core index']
  #allocation1 [shape = 'u32[144,128]{1,0:T(1,128)}', space=vmem, size = 0x12000, scoped, tag = 'internal scratch']
  %s0 = inlined_call_operand.vmem [shape: f32[8,8], index: 0, kind: input, shape index: {}]
  %s1 = inlined_call_operand.vmem [shape: f32[1,8], index: 1, kind: input, shape index: {}]
  %s2 = inlined_call_operand.vmem [shape: f32[64,16], index: 2, kind: input, shape index: {}]
  %s3 = inlined_call_operand.hbm [shape: f32[3,8], index: 3, kind: output, shape index: {}]
  %s4 = sld [smem:[#allocation0]]
  $region22: #{tpu_custom_call.1} parent=0
    _
  %s6 = ssub.s32 1, %s4
  %s7 = scalar_select 0, %s6, %s4
  $region1: #{tpu_custom_call.1} parent=0
    #allocation2 [shape = 'u8[2048]{0}', space=vmem, size = 0x800, scoped, tag = 'output window, operand 0, single buffered']
    #allocation3 [shape = 's32[1]{0}', space=sflag, size = 0x4, scoped, tag = 'scoped memory for tpu_custom_call.1']
    %8 = vsyncpa [#allocation3], 0
    // Predicated region
    $region2: #{tpu_custom_call.1} parent=1 // pred_check
      _
    $region3: #{tpu_custom_call.1} parent=1 // pred_check_branch
      %10 = sbr.rel (0) target = $region5
    $region4: #{tpu_custom_call.1} parent=1 // pred_region
      _
    $region5: #{tpu_custom_call.1} parent=1 // pred_fallthru
      _
    // Predicated region
    $region6: #{tpu_custom_call.1} parent=1 // pred_check
      _
    $region7: #{tpu_custom_call.1} parent=1 // pred_check_branch
      %12 = sbr.rel (0) target = $region9
    $region8: #{tpu_custom_call.1} parent=1 // pred_region
      _
    $region9: #{tpu_custom_call.1} parent=1 // pred_fallthru
      _
    // Predicated region
    $region10: #{tpu_custom_call.1} parent=1 // pred_check
      _
    $region11: #{tpu_custom_call.1} parent=1 // pred_check_branch
      %14 = sbr.rel (0) target = $region13
    $region12: #{tpu_custom_call.1} parent=1 // pred_region
      _
    $region13: #{tpu_custom_call.1} parent=1 // pred_fallthru
      _
    %v15 = vld [vmem:[%s0] sm:$0xff]
    %v16 = vld [vmem:[%s1] sm:$0x1]
    %v17 = vld [vmem:[%s2] sm:$0xff]
    %v18 = vld [vmem:[%s2 + $0x8] sm:$0xff]
    %v19 = vld [vmem:[%s2 + $0x10] sm:$0xff]
    %v20 = vld [vmem:[%s2 + $0x18] sm:$0xff]
    %v21 = vld [vmem:[%s2 + $0x20] sm:$0xff]
    %v22 = vld [vmem:[%s2 + $0x28] sm:$0xff]
    %v23 = vld [vmem:[%s2 + $0x30] sm:$0xff]
    %v24 = vld [vmem:[%s2 + $0x38] sm:$0xff]
    %26 = vset.pattern.permute.xlu0 0
    %27 = vperm.xlu0 %26, %v23
    %v28 = vpop.permute.xlu0 %27
    %31 = vset.pattern.permute.xlu0 0
    %32 = vperm.xlu0 %31, %v24
    %v33 = vpop.permute.xlu0 %32
    %vm35 = vcmask 64512
    %v37 = vsel %vm35, %v17, 0
    %v40 = vsel %vm35, %v18, 0
    %42 = vmatprep.subr.mxu0 0.0
    %43 = vmatpush1.msra.mxu0 0.0
    %44 = vmatprep.subr.mxu0 0.0
    %45 = vmatpush1.msra.mxu0 0.0
    %46 = vmatprep.subr.mxu0 0.0
    %47 = vmatpush1.msra.mxu0 0.0
    %48 = vmatprep.subr.mxu0 0.0
    %49 = vmatpush1.msra.mxu0 0.0
    %50 = vmatprep.subr.mxu0 0.0
    %51 = vmatpush1.msra.mxu0 0.0
    %52 = vmatprep.subr.mxu0 0.0
    %53 = vmatpush1.msra.mxu0 0.0
    %54 = vmatprep.subr.mxu0 0.0
    %55 = vmatpush1.msra.mxu0 0.0
    %56 = vmatprep.subr.mxu0 0.0
    %57 = vmatpush1.msra.mxu0 0.0
    %58 = vmatprep.subr.mxu0 0.0
    %59 = vmatpush1.msra.mxu0 0.0
    %60 = vmatprep.subr.mxu0 0.0
    %61 = vmatpush1.msra.mxu0 0.0
    %62 = vmatprep.subr.mxu0 0.0
    %63 = vmatpush1.msra.mxu0 0.0
    %64 = vmatprep.subr.mxu0 0.0
    %65 = vmatpush1.msra.mxu0 0.0
    %66 = vmatprep.subr.mxu0 0.0
    %67 = vmatpush1.msra.mxu0 0.0
    %68 = vmatprep.subr.mxu0 0.0
    %69 = vmatpush1.msra.mxu0 0.0
    %70 = vmatprep.subr.mxu0 0.0
    %71 = vmatpush1.msra.mxu0 0.0
    %72 = vmatprep.subr.mxu0 0.0
    %73 = vmatpush1.msra.mxu0 %v15
    %74 = vmatprep.subr.mxu0 0.0
    %75 = vmatpush2.msra.mxu0 0.0
    %76 = vmatprep.subr.mxu0 0.0
    %77 = vmatpush2.msra.mxu0 0.0
    %78 = vmatprep.subr.mxu0 0.0
    %79 = vmatpush2.msra.mxu0 0.0
    %80 = vmatprep.subr.mxu0 0.0
    %81 = vmatpush2.msra.mxu0 0.0
    %82 = vmatprep.subr.mxu0 0.0
    %83 = vmatpush2.msra.mxu0 0.0
    %84 = vmatprep.subr.mxu0 0.0
    %85 = vmatpush2.msra.mxu0 0.0
    %86 = vmatprep.subr.mxu0 0.0
    %87 = vmatpush2.msra.mxu0 0.0
    %88 = vmatprep.subr.mxu0 0.0
    %89 = vmatpush2.msra.mxu0 0.0
    %90 = vmatprep.subr.mxu0 0.0
    %91 = vmatpush2.msra.mxu0 0.0
    %92 = vmatprep.subr.mxu0 0.0
    %93 = vmatpush2.msra.mxu0 0.0
    %94 = vmatprep.subr.mxu0 0.0
    %95 = vmatpush2.msra.mxu0 0.0
    %96 = vmatprep.subr.mxu0 0.0
    %97 = vmatpush2.msra.mxu0 0.0
    %98 = vmatprep.subr.mxu0 0.0
    %99 = vmatpush2.msra.mxu0 0.0
    %100 = vmatprep.subr.mxu0 0.0
    %101 = vmatpush2.msra.mxu0 0.0
    %102 = vmatprep.subr.mxu0 0.0
    %103 = vmatpush2.msra.mxu0 0.0
    %104 = vmatprep.subr.mxu0 0.0
    %105 = vmatpush2.msra.mxu0 0.0
    %106 = vmatprep.mubr.f32.mxu0 0.0
    %107 = vmatmul.mubr.f32.gmra.mxu0 %v37
    %v108 = vpop.f32.mrf.mxu0
    %v109 = vadd.f32 %v28, %v108
    %v110 = vpop.f32.mrf.mxu0
    %111 = vmatprep.mubr.f32.mxu0 0.0
    %112 = vmatmul.mubr.f32.gmra.mxu0 %v40
    %v113 = vpop.f32.mrf.mxu0
    %v114 = vadd.f32 %v33, %v113
    %v115 = vpop.f32.mrf.mxu0
    %116 = vdwg.mxu0
    %v117 = vmax.f32 %v109, 0.0
    %v118 = vmax.f32 %v114, 0.0
    %119 = vset.pattern.permute.xlu0 1
    %120 = vperm.xlu0 %119, %v23
    %v121 = vpop.permute.xlu0 %120
    %123 = vset.pattern.permute.xlu0 1
    %124 = vperm.xlu0 %123, %v24
    %v125 = vpop.permute.xlu0 %124
    %vm127 = vcmask 130048
    %v129 = vsel %vm127, %v19, 0
    %v132 = vsel %vm127, %v20, 0
    %134 = vmatprep.subr.mxu0 0.0
    %135 = vmatpush1.msra.mxu0 0.0
    %136 = vmatprep.subr.mxu0 0.0
    %137 = vmatpush1.msra.mxu0 0.0
    %138 = vmatprep.subr.mxu0 0.0
    %139 = vmatpush1.msra.mxu0 0.0
    %140 = vmatprep.subr.mxu0 0.0
    %141 = vmatpush1.msra.mxu0 0.0
    %142 = vmatprep.subr.mxu0 0.0
    %143 = vmatpush1.msra.mxu0 0.0
    %144 = vmatprep.subr.mxu0 0.0
    %145 = vmatpush1.msra.mxu0 0.0
    %146 = vmatprep.subr.mxu0 0.0
    %147 = vmatpush1.msra.mxu0 0.0
    %148 = vmatprep.subr.mxu0 0.0
    %149 = vmatpush1.msra.mxu0 0.0
    %150 = vmatprep.subr.mxu0 0.0
    %151 = vmatpush1.msra.mxu0 0.0
    %152 = vmatprep.subr.mxu0 0.0
    %153 = vmatpush1.msra.mxu0 0.0
    %154 = vmatprep.subr.mxu0 0.0
    %155 = vmatpush1.msra.mxu0 0.0
    %156 = vmatprep.subr.mxu0 0.0
    %157 = vmatpush1.msra.mxu0 0.0
    %158 = vmatprep.subr.mxu0 0.0
    %159 = vmatpush1.msra.mxu0 0.0
    %160 = vmatprep.subr.mxu0 0.0
    %161 = vmatpush1.msra.mxu0 0.0
    %162 = vmatprep.subr.mxu0 0.0
    %163 = vmatpush1.msra.mxu0 %v118
    %164 = vmatprep.subr.mxu0 0.0
    %165 = vmatpush1.msra.mxu0 %v117
    %166 = vmatprep.subr.mxu0 0.0
    %167 = vmatpush2.msra.mxu0 0.0
    %168 = vmatprep.subr.mxu0 0.0
    %169 = vmatpush2.msra.mxu0 0.0
    %170 = vmatprep.subr.mxu0 0.0
    %171 = vmatpush2.msra.mxu0 0.0
    %172 = vmatprep.subr.mxu0 0.0
    %173 = vmatpush2.msra.mxu0 0.0
    %174 = vmatprep.subr.mxu0 0.0
    %175 = vmatpush2.msra.mxu0 0.0
    %176 = vmatprep.subr.mxu0 0.0
    %177 = vmatpush2.msra.mxu0 0.0
    %178 = vmatprep.subr.mxu0 0.0
    %179 = vmatpush2.msra.mxu0 0.0
    %180 = vmatprep.subr.mxu0 0.0
    %181 = vmatpush2.msra.mxu0 0.0
    %182 = vmatprep.subr.mxu0 0.0
    %183 = vmatpush2.msra.mxu0 0.0
    %184 = vmatprep.subr.mxu0 0.0
    %185 = vmatpush2.msra.mxu0 0.0
    %186 = vmatprep.subr.mxu0 0.0
    %187 = vmatpush2.msra.mxu0 0.0
    %188 = vmatprep.subr.mxu0 0.0
    %189 = vmatpush2.msra.mxu0 0.0
    %190 = vmatprep.subr.mxu0 0.0
    %191 = vmatpush2.msra.mxu0 0.0
    %192 = vmatprep.subr.mxu0 0.0
    %193 = vmatpush2.msra.mxu0 0.0
    %194 = vmatprep.subr.mxu0 0.0
    %195 = vmatpush2.msra.mxu0 0.0
    %196 = vmatprep.subr.mxu0 0.0
    %197 = vmatpush2.msra.mxu0 0.0
    %198 = vmatprep.mubr.f32.mxu0 0.0
    %199 = vmatmul.mubr.f32.gmra.mxu0 %v129
    %v200 = vpop.f32.mrf.mxu0
    %v201 = vadd.f32 %v121, %v200
    %v202 = vpop.f32.mrf.mxu0
    %203 = vmatprep.mubr.f32.mxu0 0.0
    %204 = vmatmul.mubr.f32.gmra.mxu0 %v132
    %v205 = vpop.f32.mrf.mxu0
    %v206 = vadd.f32 %v125, %v205
    %v207 = vpop.f32.mrf.mxu0
    %208 = vdwg.mxu0
    %v209 = vmax.f32 %v201, 0.0
    %v210 = vmax.f32 %v206, 0.0
    %211 = vset.pattern.permute.xlu0 2
    %212 = vperm.xlu0 %211, %v23
    %v213 = vpop.permute.xlu0 %212
    %215 = vset.pattern.permute.xlu0 2
    %216 = vperm.xlu0 %215, %v24
    %v217 = vpop.permute.xlu0 %216
    %v219 = vsel %vm127, %v21, 0
    %v222 = vsel %vm127, %v22, 0
    %224 = vmatprep.subr.mxu0 0.0
    %225 = vmatpush1.msra.mxu0 0.0
    %226 = vmatprep.subr.mxu0 0.0
    %227 = vmatpush1.msra.mxu0 0.0
    %228 = vmatprep.subr.mxu0 0.0
    %229 = vmatpush1.msra.mxu0 0.0
    %230 = vmatprep.subr.mxu0 0.0
    %231 = vmatpush1.msra.mxu0 0.0
    %232 = vmatprep.subr.mxu0 0.0
    %233 = vmatpush1.msra.mxu0 0.0
    %234 = vmatprep.subr.mxu0 0.0
    %235 = vmatpush1.msra.mxu0 0.0
    %236 = vmatprep.subr.mxu0 0.0
    %237 = vmatpush1.msra.mxu0 0.0
    %238 = vmatprep.subr.mxu0 0.0
    %239 = vmatpush1.msra.mxu0 0.0
    %240 = vmatprep.subr.mxu0 0.0
    %241 = vmatpush1.msra.mxu0 0.0
    %242 = vmatprep.subr.mxu0 0.0
    %243 = vmatpush1.msra.mxu0 0.0
    %244 = vmatprep.subr.mxu0 0.0
    %245 = vmatpush1.msra.mxu0 0.0
    %246 = vmatprep.subr.mxu0 0.0
    %247 = vmatpush1.msra.mxu0 0.0
    %248 = vmatprep.subr.mxu0 0.0
    %249 = vmatpush1.msra.mxu0 0.0
    %250 = vmatprep.subr.mxu0 0.0
    %251 = vmatpush1.msra.mxu0 0.0
    %252 = vmatprep.subr.mxu0 0.0
    %253 = vmatpush1.msra.mxu0 %v210
    %254 = vmatprep.subr.mxu0 0.0
    %255 = vmatpush1.msra.mxu0 %v209
    %256 = vmatprep.subr.mxu0 0.0
    %257 = vmatpush2.msra.mxu0 0.0
    %258 = vmatprep.subr.mxu0 0.0
    %259 = vmatpush2.msra.mxu0 0.0
    %260 = vmatprep.subr.mxu0 0.0
    %261 = vmatpush2.msra.mxu0 0.0
    %262 = vmatprep.subr.mxu0 0.0
    %263 = vmatpush2.msra.mxu0 0.0
    %264 = vmatprep.subr.mxu0 0.0
    %265 = vmatpush2.msra.mxu0 0.0
    %266 = vmatprep.subr.mxu0 0.0
    %267 = vmatpush2.msra.mxu0 0.0
    %268 = vmatprep.subr.mxu0 0.0
    %269 = vmatpush2.msra.mxu0 0.0
    %270 = vmatprep.subr.mxu0 0.0
    %271 = vmatpush2.msra.mxu0 0.0
    %272 = vmatprep.subr.mxu0 0.0
    %273 = vmatpush2.msra.mxu0 0.0
    %274 = vmatprep.subr.mxu0 0.0
    %275 = vmatpush2.msra.mxu0 0.0
    %276 = vmatprep.subr.mxu0 0.0
    %277 = vmatpush2.msra.mxu0 0.0
    %278 = vmatprep.subr.mxu0 0.0
    %279 = vmatpush2.msra.mxu0 0.0
    %280 = vmatprep.subr.mxu0 0.0
    %281 = vmatpush2.msra.mxu0 0.0
    %282 = vmatprep.subr.mxu0 0.0
    %283 = vmatpush2.msra.mxu0 0.0
    %284 = vmatprep.subr.mxu0 0.0
    %285 = vmatpush2.msra.mxu0 0.0
    %286 = vmatprep.subr.mxu0 0.0
    %287 = vmatpush2.msra.mxu0 0.0
    %288 = vmatprep.mubr.f32.mxu0 0.0
    %289 = vmatmul.mubr.f32.gmra.mxu0 %v219
    %v290 = vpop.f32.mrf.mxu0
    %v291 = vadd.f32 %v213, %v290
    %v292 = vpop.f32.mrf.mxu0
    %293 = vmatprep.mubr.f32.mxu0 0.0
    %294 = vmatmul.mubr.f32.gmra.mxu0 %v222
    %v295 = vpop.f32.mrf.mxu0
    %v296 = vpop.f32.mrf.mxu0
    %297 = vdwg.mxu0
    %v298 = vmax.f32 %v291, 0.0
    %vm299 = vcmp.ne.f32.partialorder %v291, %v291
    %v300 = vadd.f32 %v291, 0.0
    %v301 = vand.u32 2147483647, %v291
    %v302 = vsub.f32 0.0, %v301
    %v303 = vmul.f32 %v302, 1.442695
    %v304 = vpow.pop %v303
    %v305 = vadd.f32 %v304, 1.0
    %v306 = vlog2.pop %v305
    %v307 = vmul.f32 %v306, 0.6931472
    %v308 = vmul.f32 -0.5, %v304
    %v309 = vadd.f32 %v308, 1.0
    %v310 = vmul.f32 %v309, %v304
    %v311 = vand.u32 2147483647, %v304
    %vm312 = vcmp.lt.f32.partialorder %v311, 0.0004427343
    %v313 = vsel %vm312, %v310, %v307
    %v314 = vadd.f32 %v298, %v313
    %v315 = vsel %vm299, %v300, %v314
    %vm316 = vcmp.lt.f32.partialorder %v291, -20.0
    %v317 = vlog2.pop %v315
    %v318 = vmul.f32 %v317, 0.6931472
    %v319 = vsel %vm316, %v291, %v318
    %v321 = vlaneseq
    %v322 = vshrl.u32 %v321, 7
    %v323 = vsub.s32 0, %v322
    %v324 = vrot.slane %v16, %v323
    %v326 = vmul.f32 %v315, %v324
    %v328 = vrot.slane %v326, 1
    %v330 = vadd.f32 %v291, %v328
    %v331 = vadd.f32 %v319, 1.4189385
    %v332 = vmul.f32 %v16, %v16
    %v333 = vmul.f32 %v332, -0.5
    %v336 = vunpack.c.l.s4 1966171168
    %v337 = vunpack.c.0.s8 %v336
    %v338 = vlaneseq
    %v339 = vshrl.u32 %v338, 7
    %v340 = vsub.s32 %v337, %v339
    %v341 = vrot.slane %v319, %v340
    %v342 = vcombine.high %v341, %v341
    %v344 = vunpack.c.l.s4 1966171168
    %v345 = vunpack.c.0.s8 %v344
    %v346 = vlaneseq
    %v347 = vshrl.u32 %v346, 7
    %v348 = vsub.s32 %v345, %v347
    %v349 = vrot.slane %v342, %v348
    %v351 = vsub.f32 %v333, %v349
    %v352 = vsub.f32 %v351, 0.9189385
    %v353 = vtanh.pop %v330
    %v354 = vmul.f32 %v353, 2.0
    %v355 = vmul.f32 %v353, %v353
    %v356 = vsub.f32 1.0, %v355
    %v357 = vmul.f32 %v356, 2.0
    %v358 = vadd.f32 %v357, 1e-06
    %v359 = vlog2.pop %v358
    %v360 = vmul.f32 %v359, 0.6931472
    %v361 = vsub.f32 %v352, %v360
    %v362 = vadd.f32 %v361, 0.0
    %vm363 = vcmask 57344
    %364 = vst.msk [vmem:[#allocation2] sm:$0x1] %vm363, %v354
    %vm365 = vcmask 58369
    %366 = vst.msk [vmem:[#allocation2] sm:$0x2] %vm365, %v331
    %367 = vst.msk [vmem:[#allocation2 + $0x2] sm:$0x1] %vm363, %v362
    // Predicated region
    $region14: #{tpu_custom_call.1} parent=1 // pred_check
      _
    $region15: #{tpu_custom_call.1} parent=1 // pred_check_branch
      %369 = sbr.rel (0) target = $region17
    $region16: #{tpu_custom_call.1} parent=1 // pred_region
      %s371 = ssub.s32 64, 64
      %372 = vsyncadd [#allocation3], %s371
      %s374 = sshll.u32 [#allocation2], 4
      %s375 = int_to_ptr.vmem [resolvable:$true] %s374
      %377 = dma.vmem_to_hbm [thread:$0]  %s375, 64, %s3, [#allocation3]
    $region17: #{tpu_custom_call.1} parent=1 // pred_fallthru
      _
    // Predicated region
    $region18: #{tpu_custom_call.1} parent=1 // pred_check
      _
    $region19: #{tpu_custom_call.1} parent=1 // pred_check_branch
      %379 = sbr.rel (0) target = $region21
    $region20: #{tpu_custom_call.1} parent=1 // pred_region
      %380 = dma.done [#allocation3], 64
    $region21: #{tpu_custom_call.1} parent=1 // pred_fallthru
      _
    %381 = vsyncpa [#allocation3], 1

</llo_original>
